<compile_context>
chip_gen: v5e
topology: v5e:2x2
jax: 0.10.0
libtpu: 0.0.40
codegen_flags: <defaults>
</compile_context>

<pallas_src>
import functools

import jax
import jax.numpy as jnp
from jax import lax
from jax.experimental import pallas as pl
from jax.experimental.pallas import tpu as pltpu


def _basic_block_kernel(x_ref, masks_ref, w1_ref, b1_ref, w2_ref, b2_ref,
                        out_ref, *, W, BHW, compute_dtype):
    # x_ref    : (1, Cin, BHW)   batch-tile; channels on sublanes, B*H*W on lanes.
    # masks_ref: (9, BHW)        f32 halo-validity mask per tap (1.0 / 0.0).
    # w1_ref   : (Cout, 9*Cin)   conv1 weights * bn1 scale, col = (dy*3+dx)*Cin + ci (bf16)
    # b1_ref   : (Cout, 1)       folded BN1 bias (f32)
    # w2_ref   : (Cout, 9*Cout)  conv2 weights * bn2 scale (bf16)
    # b2_ref   : (Cout, 1)       folded BN2 bias (f32)
    # out_ref  : (1, Cout, BHW)
    x = x_ref[0].astype(jnp.float32)                 # (Cin, BHW); also the residual path

    def im2col(z):
        """z: (Cz, BHW) f32 -> (9*Cz, BHW) f32 patch matrix via XLU rolls + halo masks."""
        taps = []
        for dy in range(3):
            for dx in range(3):
                t = dy * 3 + dx
                off = (dy - 1) * W + (dx - 1)
                if off == 0:
                    taps.append(z)                   # centre tap: no shift, no mask
                    continue
                # shifted[q] = z[(q + off) mod BHW]; positions whose 3x3 neighbour falls
                # outside *its own image* are zeroed by the precomputed mask, which exactly
                # reproduces zero padding (row wrap and image-to-image wrap included).
                shifted = pltpu.roll(z, shift=(-off) % BHW, axis=1)
                taps.append(shifted * masks_ref[pl.ds(t, 1), :])
        return jnp.concatenate(taps, axis=0)         # (9*Cz, BHW)

    # ---- conv1 (BN1 scale pre-folded into weights): one deep MXU matmul, f32 acc ----
    p1 = im2col(x).astype(compute_dtype)             # (9*Cin, BHW)
    acc1 = jnp.dot(w1_ref[...], p1, preferred_element_type=jnp.float32)   # (Cout, BHW)
    out1 = jnp.maximum(acc1 + b1_ref[...], 0.0)      # + bn1 bias, relu (f32 on VPU)

    # ---- conv2 + bn2 bias + residual add + relu ----
    p2 = im2col(out1).astype(compute_dtype)          # (9*Cout, BHW)
    acc2 = jnp.dot(w2_ref[...], p2, preferred_element_type=jnp.float32)   # (Cout, BHW)
    out_ref[0] = jnp.maximum(acc2 + b2_ref[...] + x, 0.0).astype(out_ref.dtype)


def basic_block_pallas(x_nchw, params, *, eps=1e-5, compute_dtype=jnp.bfloat16,
                       batch_tile=None, out_dtype=None):
    (w1, g1, be1, m1, v1, w2, g2, be2, m2, v2) = params
    f32 = jnp.float32

    N, Cin, H, W = x_nchw.shape
    Cout = w1.shape[0]
    assert Cin == Cout, "BasicBlock with downsample=None requires inplanes == planes"
    HW = H * W

    if out_dtype is None:
        out_dtype = x_nchw.dtype
    if batch_tile is None:
        # Widest lane-fused RHS while keeping >= 2 grid steps (feeds both v7x TCs).
        batch_tile = N // 2 if (N >= 2 and N % 2 == 0) else 1
    B = batch_tile
    assert N % B == 0, f"batch_tile {B} must divide batch {N}"
    G = N // B
    BHW = B * HW
    assert BHW % 128 == 0, "H*W*batch_tile must be a multiple of 128 (pad HW otherwise)"

    # ---- Fold BatchNorm (inference) into per-channel scale/bias, all in f32 ----
    s1 = (g1 / jnp.sqrt(v1 + eps)).astype(f32)
    b1 = (be1 - m1 * s1).astype(f32)
    s2 = (g2 / jnp.sqrt(v2 + eps)).astype(f32)
    b2 = (be2 - m2 * s2).astype(f32)

    # Fold the BN scale into the conv weights (f32) BEFORE the bf16 cast; layout
    # OIHW (Cout, Cz, 3, 3) -> (Cout, (dy*3+dx)*Cz + ci), bf16 MXU operand.
    def fold_weight(w, s, Cz):
        w = w.astype(f32) * s[:, None, None, None]
        return jnp.transpose(w, (0, 2, 3, 1)).reshape(Cout, 9 * Cz).astype(compute_dtype)

    w1_mat = fold_weight(w1, s1, Cin)
    w2_mat = fold_weight(w2, s2, Cout)

    # ---- Activations: (N, C, H, W) -> (G, C, B*HW); B images side-by-side on lanes.
    # (For B == 1 this is a free reshape; for B > 1 it is cheap layout plumbing.)
    x_g = x_nchw.reshape(G, B, Cin, HW).transpose(0, 2, 1, 3).reshape(G, Cin, BHW)

    # ---- Halo-validity masks, dense 2-D (9, B*HW), resident across the grid ----
    # masks[dy*3+dx, b*HW + y*W + x] = 1 iff (y+dy-1, x+dx-1) is inside the image.
    yy, xx = jnp.meshgrid(jnp.arange(H), jnp.arange(W), indexing="ij")
    yy = yy.reshape(1, HW)
    xx = xx.reshape(1, HW)
    rows = []
    for dy in range(3):
        for dx in range(3):
            oy, ox = dy - 1, dx - 1
            rows.append((yy + oy >= 0) & (yy + oy < H) & (xx + ox >= 0) & (xx + ox < W))
    masks = jnp.concatenate(rows, axis=0).astype(f32)        # (9, HW)
    masks = jnp.tile(masks, (1, B))                          # (9, B*HW)

    # ---- vmem limit derived from the per-step footprint (2x headroom, 2x dbl-buffer IO) ----
    cd_size = jnp.dtype(compute_dtype).itemsize
    io_bytes = (Cin * BHW * x_nchw.dtype.itemsize            # x block
                + Cout * BHW * jnp.dtype(out_dtype).itemsize  # out block
                + 9 * BHW * 4                                 # halo masks
                + 9 * (Cin + Cout) * Cout * cd_size           # folded weights
                + 2 * Cout * 4)                               # biases
    tmp_bytes = (9 * (Cin + Cout) * BHW * (4 + cd_size)       # f32 patches + bf16 casts
                 + 4 * Cout * BHW * 4                         # acc1/out1/acc2/out2 (f32)
                 + Cin * BHW * 4)                             # residual copy
    vmem_limit_bytes = int(min(32 << 20, max(8 << 20, 2 * (2 * io_bytes + tmp_bytes))))

    kernel = functools.partial(_basic_block_kernel, W=W, BHW=BHW,
                               compute_dtype=compute_dtype)

    out_g = pl.pallas_call(
        kernel,
        out_shape=jax.ShapeDtypeStruct((G, Cout, BHW), out_dtype),
        grid_spec=pltpu.PrefetchScalarGridSpec(
            num_scalar_prefetch=0,
            grid=(G,),
            in_specs=[
                pl.BlockSpec((1, Cin, BHW), lambda g: (g, 0, 0)),
                pl.BlockSpec((9, BHW), lambda g: (0, 0)),
                pl.BlockSpec((Cout, 9 * Cin), lambda g: (0, 0)),
                pl.BlockSpec((Cout, 1), lambda g: (0, 0)),
                pl.BlockSpec((Cout, 9 * Cout), lambda g: (0, 0)),
                pl.BlockSpec((Cout, 1), lambda g: (0, 0)),
            ],
            out_specs=pl.BlockSpec((1, Cout, BHW), lambda g: (g, 0, 0)),
        ),
        compiler_params=pltpu.CompilerParams(
            dimension_semantics=("parallel",),
            vmem_limit_bytes=vmem_limit_bytes,
        ),
    )(x_g, masks, w1_mat, b1.reshape(Cout, 1), w2_mat, b2.reshape(Cout, 1))

    # (G, Cout, B*HW) -> (N, Cout, H, W)
    return out_g.reshape(G, Cout, B, HW).transpose(0, 2, 1, 3).reshape(N, Cout, H, W)


def basic_block_reference_matched(x, params, eps=1e-5, compute_dtype=jnp.bfloat16):
    """Pure-JAX reference with the kernel's operand-rounding policy: BN scale folded
    into the conv weights in f32, weights/activations cast to bf16 for the conv,
    f32 accumulation, bias/relu/residual in f32.  Isolates implementation bugs."""
    (w1, g1, be1, m1, v1, w2, g2, be2, m2, v2) = params
    s1 = g1 / jnp.sqrt(v1 + eps)
    b1 = be1 - m1 * s1
    s2 = g2 / jnp.sqrt(v2 + eps)
    b2 = be2 - m2 * s2
    w1s = (w1 * s1[:, None, None, None]).astype(compute_dtype)
    w2s = (w2 * s2[:, None, None, None]).astype(compute_dtype)

    def conv(a, w):
        return lax.conv_general_dilated(
            a.astype(compute_dtype), w, (1, 1), ((1, 1), (1, 1)),
            dimension_numbers=("NCHW", "OIHW", "NCHW"),
            preferred_element_type=jnp.float32)

    out = jax.nn.relu(conv(x, w1s) + b1[None, :, None, None])
    out = conv(out, w2s) + b2[None, :, None, None]
    return jax.nn.relu(out + x)


def basic_block_reference_f32(x, params, eps=1e-5):
    """Module-faithful f32 reference (conv -> bn -> relu -> conv -> bn -> +x -> relu)."""
    (w1, g1, be1, m1, v1, w2, g2, be2, m2, v2) = params

    def conv(a, w):
        return lax.conv_general_dilated(
            a, w, (1, 1), ((1, 1), (1, 1)),
            dimension_numbers=("NCHW", "OIHW", "NCHW"))

    def bn(a, g, b, m, v):
        scale = (g / jnp.sqrt(v + eps))[None, :, None, None]
        return (a - m[None, :, None, None]) * scale + b[None, :, None, None]

    out = jax.nn.relu(bn(conv(x, w1), g1, be1, m1, v1))
    out = bn(conv(out, w2), g2, be2, m2, v2)
    return jax.nn.relu(out + x)


if __name__ == "__main__":
    # Small shapes consistent with the module: inplanes = planes = 8, 16x16 images.
    # N=4 so the default batch-tile (B=2) exercises the lane-fused path with 2 grid steps.
    N, C, H, W = 4, 8, 16, 16

    key = jax.random.PRNGKey(0)
    kx, kw1, kw2, kg1, kb1, km1, kv1, kg2, kb2, km2, kv2 = jax.random.split(key, 11)

    x = jax.random.normal(kx, (N, C, H, W), dtype=jnp.float32)

    # Conv: OIHW, no bias; BN: affine + running stats (eval mode).
    w1 = 0.1 * jax.random.normal(kw1, (C, C, 3, 3), dtype=jnp.float32)
    w2 = 0.1 * jax.random.normal(kw2, (C, C, 3, 3), dtype=jnp.float32)
    g1 = 1.0 + 0.1 * jax.random.normal(kg1, (C,), dtype=jnp.float32)
    be1 = 0.1 * jax.random.normal(kb1, (C,), dtype=jnp.float32)
    m1 = 0.1 * jax.random.normal(km1, (C,), dtype=jnp.float32)
    v1 = jax.random.uniform(kv1, (C,), minval=0.5, maxval=1.5, dtype=jnp.float32)
    g2 = 1.0 + 0.1 * jax.random.normal(kg2, (C,), dtype=jnp.float32)
    be2 = 0.1 * jax.random.normal(kb2, (C,), dtype=jnp.float32)
    m2 = 0.1 * jax.random.normal(km2, (C,), dtype=jnp.float32)
    v2 = jax.random.uniform(kv2, (C,), minval=0.5, maxval=1.5, dtype=jnp.float32)

    params = (w1, g1, be1, m1, v1, w2, g2, be2, m2, v2)

    out = jax.jit(basic_block_pallas)(x, params)
    out = jax.block_until_ready(out)
    assert out.shape == (N, C, H, W), out.shape

    # Tight check vs. matched-rounding reference (same bf16 operand policy).
    ref_m = jax.block_until_ready(basic_block_reference_matched(x, params))
    err_m = float(jnp.max(jnp.abs(out - ref_m)))
    assert err_m < 2e-3, f"matched-reference max abs error {err_m}"

    # Loose check vs. exact f32 module semantics (bf16 MXU operand rounding only).
    ref_f = jax.block_until_ready(basic_block_reference_f32(x, params))
    err_f = float(jnp.max(jnp.abs(out - ref_f)))
    assert err_f < 6e-2, f"f32-reference max abs error {err_f}"

    print("KERNEL_OK")
</pallas_src>

<mosaic_0001>
module attributes {stable_mosaic.version = 11 : i64} {
  func.func @_basic_block_kernel(%arg0: i32, %arg1: memref<1x8x512xf32, #tpu.memory_space<vmem>>, %arg2: memref<9x512xf32, #tpu.memory_space<vmem>>, %arg3: memref<8x72xbf16, #tpu.memory_space<vmem>>, %arg4: memref<8x1xf32, #tpu.memory_space<vmem>>, %arg5: memref<8x72xbf16, #tpu.memory_space<vmem>>, %arg6: memref<8x1xf32, #tpu.memory_space<vmem>>, %arg7: memref<1x8x512xf32, #tpu.memory_space<vmem>>) attributes {dimension_semantics = [#tpu.dimension_semantics<parallel>], iteration_bounds = array<i64: 2>, scalar_prefetch = 0 : i64, scratch_operands = 0 : i64, tpu.core_type = #tpu.core_type<tc>, window_params = [{transform_indices = @transform_0, window_bounds = array<i64: 1, 8, 512>}, {pipeline_mode = #tpu.pipeline_mode<synchronous>, transform_indices = @transform_1, window_bounds = array<i64: 9, 512>}, {pipeline_mode = #tpu.pipeline_mode<synchronous>, transform_indices = @transform_2, window_bounds = array<i64: 8, 72>}, {pipeline_mode = #tpu.pipeline_mode<synchronous>, transform_indices = @transform_3, window_bounds = array<i64: 8, 1>}, {pipeline_mode = #tpu.pipeline_mode<synchronous>, transform_indices = @transform_4, window_bounds = array<i64: 8, 72>}, {pipeline_mode = #tpu.pipeline_mode<synchronous>, transform_indices = @transform_5, window_bounds = array<i64: 8, 1>}, {transform_indices = @transform_6, window_bounds = array<i64: 1, 8, 512>}]} {
    %c0 = arith.constant 0 : index
    %c0_0 = arith.constant 0 : index
    %c0_1 = arith.constant 0 : index
    %0 = vector.load %arg1[%c0, %c0_0, %c0_1] : memref<1x8x512xf32, #tpu.memory_space<vmem>>, vector<1x8x512xf32>
    %1 = vector.shape_cast %0 : vector<1x8x512xf32> to vector<8x512xf32>
    %c17_i32 = arith.constant 17 : i32
    %2 = tpu.dynamic_rotate %1 by %c17_i32 dim 1 : vector<8x512xf32>, i32 -> vector<8x512xf32>
    %c0_2 = arith.constant 0 : index
    %c0_3 = arith.constant 0 : index
    %3 = vector.load %arg2[%c0_2, %c0_3] : memref<9x512xf32, #tpu.memory_space<vmem>>, vector<1x512xf32>
    %4 = vector.broadcast %3 : vector<1x512xf32> to vector<8x512xf32>
    %5 = arith.mulf %2, %4 : vector<8x512xf32>
    %c16_i32 = arith.constant 16 : i32
    %6 = tpu.dynamic_rotate %1 by %c16_i32 dim 1 : vector<8x512xf32>, i32 -> vector<8x512xf32>
    %c1 = arith.constant 1 : index
    %c0_4 = arith.constant 0 : index
    %7 = vector.load %arg2[%c1, %c0_4] : memref<9x512xf32, #tpu.memory_space<vmem>>, vector<1x512xf32>
    %8 = vector.broadcast %7 : vector<1x512xf32> to vector<8x512xf32>
    %9 = arith.mulf %6, %8 : vector<8x512xf32>
    %c15_i32 = arith.constant 15 : i32
    %10 = tpu.dynamic_rotate %1 by %c15_i32 dim 1 : vector<8x512xf32>, i32 -> vector<8x512xf32>
    %c2 = arith.constant 2 : index
    %c0_5 = arith.constant 0 : index
    %11 = vector.load %arg2[%c2, %c0_5] : memref<9x512xf32, #tpu.memory_space<vmem>>, vector<1x512xf32>
    %12 = vector.broadcast %11 : vector<1x512xf32> to vector<8x512xf32>
    %13 = arith.mulf %10, %12 : vector<8x512xf32>
    %c1_i32 = arith.constant 1 : i32
    %14 = tpu.dynamic_rotate %1 by %c1_i32 dim 1 : vector<8x512xf32>, i32 -> vector<8x512xf32>
    %c3 = arith.constant 3 : index
    %c0_6 = arith.constant 0 : index
    %15 = vector.load %arg2[%c3, %c0_6] : memref<9x512xf32, #tpu.memory_space<vmem>>, vector<1x512xf32>
    %16 = vector.broadcast %15 : vector<1x512xf32> to vector<8x512xf32>
    %17 = arith.mulf %14, %16 : vector<8x512xf32>
    %c511_i32 = arith.constant 511 : i32
    %18 = tpu.dynamic_rotate %1 by %c511_i32 dim 1 : vector<8x512xf32>, i32 -> vector<8x512xf32>
    %c5 = arith.constant 5 : index
    %c0_7 = arith.constant 0 : index
    %19 = vector.load %arg2[%c5, %c0_7] : memref<9x512xf32, #tpu.memory_space<vmem>>, vector<1x512xf32>
    %20 = vector.broadcast %19 : vector<1x512xf32> to vector<8x512xf32>
    %21 = arith.mulf %18, %20 : vector<8x512xf32>
    %c497_i32 = arith.constant 497 : i32
    %22 = tpu.dynamic_rotate %1 by %c497_i32 dim 1 : vector<8x512xf32>, i32 -> vector<8x512xf32>
    %c6 = arith.constant 6 : index
    %c0_8 = arith.constant 0 : index
    %23 = vector.load %arg2[%c6, %c0_8] : memref<9x512xf32, #tpu.memory_space<vmem>>, vector<1x512xf32>
    %24 = vector.broadcast %23 : vector<1x512xf32> to vector<8x512xf32>
    %25 = arith.mulf %22, %24 : vector<8x512xf32>
    %c496_i32 = arith.constant 496 : i32
    %26 = tpu.dynamic_rotate %1 by %c496_i32 dim 1 : vector<8x512xf32>, i32 -> vector<8x512xf32>
    %c7 = arith.constant 7 : index
    %c0_9 = arith.constant 0 : index
    %27 = vector.load %arg2[%c7, %c0_9] : memref<9x512xf32, #tpu.memory_space<vmem>>, vector<1x512xf32>
    %28 = vector.broadcast %27 : vector<1x512xf32> to vector<8x512xf32>
    %29 = arith.mulf %26, %28 : vector<8x512xf32>
    %c495_i32 = arith.constant 495 : i32
    %30 = tpu.dynamic_rotate %1 by %c495_i32 dim 1 : vector<8x512xf32>, i32 -> vector<8x512xf32>
    %c8 = arith.constant 8 : index
    %c0_10 = arith.constant 0 : index
    %31 = vector.load %arg2[%c8, %c0_10] : memref<9x512xf32, #tpu.memory_space<vmem>>, vector<1x512xf32>
    %32 = vector.broadcast %31 : vector<1x512xf32> to vector<8x512xf32>
    %33 = arith.mulf %30, %32 : vector<8x512xf32>
    %34 = tpu.concatenate %5, %9, %13, %17, %1, %21, %25, %29, %33 in 0 : vector<8x512xf32>, vector<8x512xf32>, vector<8x512xf32>, vector<8x512xf32>, vector<8x512xf32>, vector<8x512xf32>, vector<8x512xf32>, vector<8x512xf32>, vector<8x512xf32> -> vector<72x512xf32>
    %35 = arith.truncf %34 : vector<72x512xf32> to vector<72x512xbf16>
    %c0_11 = arith.constant 0 : index
    %c0_12 = arith.constant 0 : index
    %36 = vector.load %arg3[%c0_11, %c0_12] : memref<8x72xbf16, #tpu.memory_space<vmem>>, vector<8x72xbf16>
    %cst = arith.constant dense<0.000000e+00> : vector<8x512xf32>
    %37 = tpu.matmul %36, %35, %cst {dimension_numbers = #tpu.dot_dimension_numbers<[1], [0], [0], [1], [0, 0, 1, 1], [], []>} : vector<8x72xbf16>, vector<72x512xbf16>, vector<8x512xf32> -> vector<8x512xf32>
    %c0_13 = arith.constant 0 : index
    %c0_14 = arith.constant 0 : index
    %38 = vector.load %arg4[%c0_13, %c0_14] : memref<8x1xf32, #tpu.memory_space<vmem>>, vector<8x1xf32>
    %39 = vector.broadcast %38 : vector<8x1xf32> to vector<8x512xf32>
    %40 = arith.addf %37, %39 : vector<8x512xf32>
    %cst_15 = arith.constant 0.000000e+00 : f32
    %41 = vector.broadcast %cst_15 : f32 to vector<8x512xf32>
    %42 = arith.maximumf %40, %41 : vector<8x512xf32>
    %c17_i32_16 = arith.constant 17 : i32
    %43 = tpu.dynamic_rotate %42 by %c17_i32_16 dim 1 : vector<8x512xf32>, i32 -> vector<8x512xf32>
    %c0_17 = arith.constant 0 : index
    %c0_18 = arith.constant 0 : index
    %44 = vector.load %arg2[%c0_17, %c0_18] : memref<9x512xf32, #tpu.memory_space<vmem>>, vector<1x512xf32>
    %45 = vector.broadcast %44 : vector<1x512xf32> to vector<8x512xf32>
    %46 = arith.mulf %43, %45 : vector<8x512xf32>
    %c16_i32_19 = arith.constant 16 : i32
    %47 = tpu.dynamic_rotate %42 by %c16_i32_19 dim 1 : vector<8x512xf32>, i32 -> vector<8x512xf32>
    %c1_20 = arith.constant 1 : index
    %c0_21 = arith.constant 0 : index
    %48 = vector.load %arg2[%c1_20, %c0_21] : memref<9x512xf32, #tpu.memory_space<vmem>>, vector<1x512xf32>
    %49 = vector.broadcast %48 : vector<1x512xf32> to vector<8x512xf32>
    %50 = arith.mulf %47, %49 : vector<8x512xf32>
    %c15_i32_22 = arith.constant 15 : i32
    %51 = tpu.dynamic_rotate %42 by %c15_i32_22 dim 1 : vector<8x512xf32>, i32 -> vector<8x512xf32>
    %c2_23 = arith.constant 2 : index
    %c0_24 = arith.constant 0 : index
    %52 = vector.load %arg2[%c2_23, %c0_24] : memref<9x512xf32, #tpu.memory_space<vmem>>, vector<1x512xf32>
    %53 = vector.broadcast %52 : vector<1x512xf32> to vector<8x512xf32>
    %54 = arith.mulf %51, %53 : vector<8x512xf32>
    %c1_i32_25 = arith.constant 1 : i32
    %55 = tpu.dynamic_rotate %42 by %c1_i32_25 dim 1 : vector<8x512xf32>, i32 -> vector<8x512xf32>
    %c3_26 = arith.constant 3 : index
    %c0_27 = arith.constant 0 : index
    %56 = vector.load %arg2[%c3_26, %c0_27] : memref<9x512xf32, #tpu.memory_space<vmem>>, vector<1x512xf32>
    %57 = vector.broadcast %56 : vector<1x512xf32> to vector<8x512xf32>
    %58 = arith.mulf %55, %57 : vector<8x512xf32>
    %c511_i32_28 = arith.constant 511 : i32
    %59 = tpu.dynamic_rotate %42 by %c511_i32_28 dim 1 : vector<8x512xf32>, i32 -> vector<8x512xf32>
    %c5_29 = arith.constant 5 : index
    %c0_30 = arith.constant 0 : index
    %60 = vector.load %arg2[%c5_29, %c0_30] : memref<9x512xf32, #tpu.memory_space<vmem>>, vector<1x512xf32>
    %61 = vector.broadcast %60 : vector<1x512xf32> to vector<8x512xf32>
    %62 = arith.mulf %59, %61 : vector<8x512xf32>
    %c497_i32_31 = arith.constant 497 : i32
    %63 = tpu.dynamic_rotate %42 by %c497_i32_31 dim 1 : vector<8x512xf32>, i32 -> vector<8x512xf32>
    %c6_32 = arith.constant 6 : index
    %c0_33 = arith.constant 0 : index
    %64 = vector.load %arg2[%c6_32, %c0_33] : memref<9x512xf32, #tpu.memory_space<vmem>>, vector<1x512xf32>
    %65 = vector.broadcast %64 : vector<1x512xf32> to vector<8x512xf32>
    %66 = arith.mulf %63, %65 : vector<8x512xf32>
    %c496_i32_34 = arith.constant 496 : i32
    %67 = tpu.dynamic_rotate %42 by %c496_i32_34 dim 1 : vector<8x512xf32>, i32 -> vector<8x512xf32>
    %c7_35 = arith.constant 7 : index
    %c0_36 = arith.constant 0 : index
    %68 = vector.load %arg2[%c7_35, %c0_36] : memref<9x512xf32, #tpu.memory_space<vmem>>, vector<1x512xf32>
    %69 = vector.broadcast %68 : vector<1x512xf32> to vector<8x512xf32>
    %70 = arith.mulf %67, %69 : vector<8x512xf32>
    %c495_i32_37 = arith.constant 495 : i32
    %71 = tpu.dynamic_rotate %42 by %c495_i32_37 dim 1 : vector<8x512xf32>, i32 -> vector<8x512xf32>
    %c8_38 = arith.constant 8 : index
    %c0_39 = arith.constant 0 : index
    %72 = vector.load %arg2[%c8_38, %c0_39] : memref<9x512xf32, #tpu.memory_space<vmem>>, vector<1x512xf32>
    %73 = vector.broadcast %72 : vector<1x512xf32> to vector<8x512xf32>
    %74 = arith.mulf %71, %73 : vector<8x512xf32>
    %75 = tpu.concatenate %46, %50, %54, %58, %42, %62, %66, %70, %74 in 0 : vector<8x512xf32>, vector<8x512xf32>, vector<8x512xf32>, vector<8x512xf32>, vector<8x512xf32>, vector<8x512xf32>, vector<8x512xf32>, vector<8x512xf32>, vector<8x512xf32> -> vector<72x512xf32>
    %76 = arith.truncf %75 : vector<72x512xf32> to vector<72x512xbf16>
    %c0_40 = arith.constant 0 : index
    %c0_41 = arith.constant 0 : index
    %77 = vector.load %arg5[%c0_40, %c0_41] : memref<8x72xbf16, #tpu.memory_space<vmem>>, vector<8x72xbf16>
    %cst_42 = arith.constant dense<0.000000e+00> : vector<8x512xf32>
    %78 = tpu.matmul %77, %76, %cst_42 {dimension_numbers = #tpu.dot_dimension_numbers<[1], [0], [0], [1], [0, 0, 1, 1], [], []>} : vector<8x72xbf16>, vector<72x512xbf16>, vector<8x512xf32> -> vector<8x512xf32>
    %c0_43 = arith.constant 0 : index
    %c0_44 = arith.constant 0 : index
    %79 = vector.load %arg6[%c0_43, %c0_44] : memref<8x1xf32, #tpu.memory_space<vmem>>, vector<8x1xf32>
    %80 = vector.broadcast %79 : vector<8x1xf32> to vector<8x512xf32>
    %81 = arith.addf %78, %80 : vector<8x512xf32>
    %82 = arith.addf %81, %1 : vector<8x512xf32>
    %cst_45 = arith.constant 0.000000e+00 : f32
    %83 = vector.broadcast %cst_45 : f32 to vector<8x512xf32>
    %84 = arith.maximumf %82, %83 : vector<8x512xf32>
    %c0_46 = arith.constant 0 : index
    %c0_47 = arith.constant 0 : index
    %c0_48 = arith.constant 0 : index
    %85 = vector.load %arg7[%c0_46, %c0_47, %c0_48] : memref<1x8x512xf32, #tpu.memory_space<vmem>>, vector<1x8x512xf32>
    %86 = vector.shape_cast %85 : vector<1x8x512xf32> to vector<8x512xf32>
    %87 = vector.shape_cast %84 : vector<8x512xf32> to vector<1x8x512xf32>
    tpu.vector_store %arg7[%c0_46, %c0_47, %c0_48], %87 {strides = array<i32>} : memref<1x8x512xf32, #tpu.memory_space<vmem>>, vector<1x8x512xf32>,
    return
  }
  func.func @transform_0(%arg0: i32) -> (i32, i32, i32) {
    %c0_i32 = arith.constant 0 : i32
    %c0_i32_0 = arith.constant 0 : i32
    %c0_i32_1 = arith.constant 0 : i32
    return %arg0, %c0_i32, %c0_i32_0 : i32, i32, i32
  }
  func.func @transform_1(%arg0: i32) -> (i32, i32) {
    %c0_i32 = arith.constant 0 : i32
    %c0_i32_0 = arith.constant 0 : i32
    %c0_i32_1 = arith.constant 0 : i32
    return %c0_i32, %c0_i32_0 : i32, i32
  }
  func.func @transform_2(%arg0: i32) -> (i32, i32) {
    %c0_i32 = arith.constant 0 : i32
    %c0_i32_0 = arith.constant 0 : i32
    %c0_i32_1 = arith.constant 0 : i32
    return %c0_i32, %c0_i32_0 : i32, i32
  }
  func.func @transform_3(%arg0: i32) -> (i32, i32) {
    %c0_i32 = arith.constant 0 : i32
    %c0_i32_0 = arith.constant 0 : i32
    %c0_i32_1 = arith.constant 0 : i32
    return %c0_i32, %c0_i32_0 : i32, i32
  }
  func.func @transform_4(%arg0: i32) -> (i32, i32) {
    %c0_i32 = arith.constant 0 : i32
    %c0_i32_0 = arith.constant 0 : i32
    %c0_i32_1 = arith.constant 0 : i32
    return %c0_i32, %c0_i32_0 : i32, i32
  }
  func.func @transform_5(%arg0: i32) -> (i32, i32) {
    %c0_i32 = arith.constant 0 : i32
    %c0_i32_0 = arith.constant 0 : i32
    %c0_i32_1 = arith.constant 0 : i32
    return %c0_i32, %c0_i32_0 : i32, i32
  }
  func.func @transform_6(%arg0: i32) -> (i32, i32, i32) {
    %c0_i32 = arith.constant 0 : i32
    %c0_i32_0 = arith.constant 0 : i32
    %c0_i32_1 = arith.constant 0 : i32
    return %arg0, %c0_i32, %c0_i32_0 : i32, i32, i32
  }
}

</mosaic_0001>

<llo_original>
// kernel: basic_block_pallas.1
$region0: #{basic_block_pallas.1}
  #allocation0 [shape = 'u32[]', space=smem, size = 0x4, offset = 0x4, fixed_abs, tag = 'smem constant byte address 0x4 - core index']
  #allocation1 [shape = 'u32[72,128]{1,0:T(1,128)}', space=vmem, size = 0x9000, scoped, tag = 'internal scratch']
  %s0 = inlined_call_operand.vmem [shape: f32[2,8,512], index: 0, kind: input, shape index: {}]
  %s1 = inlined_call_operand.vmem [shape: f32[9,512], index: 1, kind: input, shape index: {}]
  %s2 = inlined_call_operand.vmem [shape: bf16[8,72], index: 2, kind: input, shape index: {}]
  %s3 = inlined_call_operand.vmem [shape: f32[8,1], index: 3, kind: input, shape index: {}]
  %s4 = inlined_call_operand.vmem [shape: bf16[8,72], index: 4, kind: input, shape index: {}]
  %s5 = inlined_call_operand.vmem [shape: f32[8,1], index: 5, kind: input, shape index: {}]
  %s6 = inlined_call_operand.vmem [shape: f32[2,8,512], index: 6, kind: output, shape index: {}]
  %s7 = sld [smem:[#allocation0]]
  $region57: #{basic_block_pallas.1} parent=0
    _
  %s9 = ssub.s32 1, %s7
  %s10 = scalar_select 0, %s9, %s7
  loop: start=0, step=1, limit=4
  $region2: #{basic_block_pallas.1} parent=0 // loop_pre_header
    _
  $region3: #{basic_block_pallas.1} parent=0 // loop_header
    %s12 = sphi 0, %s16
    %p13 = scmp.ge.s32.totalorder %s12, 4
    %s22 = sphi 0, %s24
    %s25 = sphi 0, %s22
    %s26 = sphi 0, %s25
    %s42 = sphi 0, %s26
    %s46 = sphi 0, %s46
    %s48 = sphi 0, %s46
    %s49 = sphi 0, %s48
    %s63 = sphi 0, %s49
    %s67 = sphi 0, %s67
    %s69 = sphi 0, %s67
    %s70 = sphi 0, %s69
    %s84 = sphi 0, %s70
    %s88 = sphi 0, %s88
    %s90 = sphi 0, %s88
    %s91 = sphi 0, %s90
    %s105 = sphi 0, %s91
    %s109 = sphi 0, %s109
    %s111 = sphi 0, %s109
    %s112 = sphi 0, %s111
    %s126 = sphi 0, %s112
    %s130 = sphi 0, %s130
    %s132 = sphi 0, %s130
    %s133 = sphi 0, %s132
    %s147 = sphi 0, %s133
    %s153 = sphi 0, %s155
    %s156 = sphi 0, %s153
    %s157 = sphi 0, %s156
    %s173 = sphi 0, %s157
  $region4: #{basic_block_pallas.1} parent=0 // loop_header_branch
    %15 = sbr.rel (%p13) target = $region8
  $region5: #{basic_block_pallas.1} parent=0 // loop_body
    %s17 = ssub.s32 %s12, 1
    %s18 = ssub.s32 %s12, 2
    %s19 = sadd.s32 %s12, 1
    %s20 = ssub.s32 %s12, %s19
    %p21 = scmp.eq.s32.totalorder %s20, 0
    %s23 = sadd.s32 %s22, 1
    %s24 = scalar_select %p21, %s22, %s23
    %p27 = pneg %p21
    %p28 = scmp.eq.s32.totalorder %s12, 1
    %p29 = por %p27, %p28
    %p30 = scmp.ne.s32.totalorder %s22, %s25
    %p31 = scmp.eq.s32.totalorder %s12, 0
    %p32 = por %p30, %p31
    %p33 = scmp.ne.s32.totalorder %s22, %s25
    %p34 = scmp.eq.s32.totalorder %s17, 1
    %p35 = por %p33, %p34
    %p36 = scmp.ne.s32.totalorder %s25, %s26
    %p37 = scmp.eq.s32.totalorder %s17, 0
    %p38 = por %p36, %p37
    %p39 = scmp.ne.s32.totalorder %s25, %s26
    %p40 = scmp.eq.s32.totalorder %s18, 1
    %p41 = por %p39, %p40
    %p43 = scmp.ne.s32.totalorder %s26, %s42
    %p44 = scmp.eq.s32.totalorder %s18, 0
    %p45 = por %p43, %p44
    %s47 = sadd.s32 %s46, 1
    %p50 = scmp.eq.s32.totalorder %s12, 1
    %p51 = scmp.ne.s32.totalorder %s46, %s48
    %p52 = scmp.eq.s32.totalorder %s12, 0
    %p53 = por %p51, %p52
    %p54 = scmp.ne.s32.totalorder %s46, %s48
    %p55 = scmp.eq.s32.totalorder %s17, 1
    %p56 = por %p54, %p55
    %p57 = scmp.ne.s32.totalorder %s48, %s49
    %p58 = scmp.eq.s32.totalorder %s17, 0
    %p59 = por %p57, %p58
    %p60 = scmp.ne.s32.totalorder %s48, %s49
    %p61 = scmp.eq.s32.totalorder %s18, 1
    %p62 = por %p60, %p61
    %p64 = scmp.ne.s32.totalorder %s49, %s63
    %p65 = scmp.eq.s32.totalorder %s18, 0
    %p66 = por %p64, %p65
    %s68 = sadd.s32 %s67, 1
    %p71 = scmp.eq.s32.totalorder %s12, 1
    %p72 = scmp.ne.s32.totalorder %s67, %s69
    %p73 = scmp.eq.s32.totalorder %s12, 0
    %p74 = por %p72, %p73
    %p75 = scmp.ne.s32.totalorder %s67, %s69
    %p76 = scmp.eq.s32.totalorder %s17, 1
    %p77 = por %p75, %p76
    %p78 = scmp.ne.s32.totalorder %s69, %s70
    %p79 = scmp.eq.s32.totalorder %s17, 0
    %p80 = por %p78, %p79
    %p81 = scmp.ne.s32.totalorder %s69, %s70
    %p82 = scmp.eq.s32.totalorder %s18, 1
    %p83 = por %p81, %p82
    %p85 = scmp.ne.s32.totalorder %s70, %s84
    %p86 = scmp.eq.s32.totalorder %s18, 0
    %p87 = por %p85, %p86
    %s89 = sadd.s32 %s88, 1
    %p92 = scmp.eq.s32.totalorder %s12, 1
    %p93 = scmp.ne.s32.totalorder %s88, %s90
    %p94 = scmp.eq.s32.totalorder %s12, 0
    %p95 = por %p93, %p94
    %p96 = scmp.ne.s32.totalorder %s88, %s90
    %p97 = scmp.eq.s32.totalorder %s17, 1
    %p98 = por %p96, %p97
    %p99 = scmp.ne.s32.totalorder %s90, %s91
    %p100 = scmp.eq.s32.totalorder %s17, 0
    %p101 = por %p99, %p100
    %p102 = scmp.ne.s32.totalorder %s90, %s91
    %p103 = scmp.eq.s32.totalorder %s18, 1
    %p104 = por %p102, %p103
    %p106 = scmp.ne.s32.totalorder %s91, %s105
    %p107 = scmp.eq.s32.totalorder %s18, 0
    %p108 = por %p106, %p107
    %s110 = sadd.s32 %s109, 1
    %p113 = scmp.eq.s32.totalorder %s12, 1
    %p114 = scmp.ne.s32.totalorder %s109, %s111
    %p115 = scmp.eq.s32.totalorder %s12, 0
    %p116 = por %p114, %p115
    %p117 = scmp.ne.s32.totalorder %s109, %s111
    %p118 = scmp.eq.s32.totalorder %s17, 1
    %p119 = por %p117, %p118
    %p120 = scmp.ne.s32.totalorder %s111, %s112
    %p121 = scmp.eq.s32.totalorder %s17, 0
    %p122 = por %p120, %p121
    %p123 = scmp.ne.s32.totalorder %s111, %s112
    %p124 = scmp.eq.s32.totalorder %s18, 1
    %p125 = por %p123, %p124
    %p127 = scmp.ne.s32.totalorder %s112, %s126
    %p128 = scmp.eq.s32.totalorder %s18, 0
    %p129 = por %p127, %p128
    %s131 = sadd.s32 %s130, 1
    %p134 = scmp.eq.s32.totalorder %s12, 1
    %p135 = scmp.ne.s32.totalorder %s130, %s132
    %p136 = scmp.eq.s32.totalorder %s12, 0
    %p137 = por %p135, %p136
    %p138 = scmp.ne.s32.totalorder %s130, %s132
    %p139 = scmp.eq.s32.totalorder %s17, 1
    %p140 = por %p138, %p139
    %p141 = scmp.ne.s32.totalorder %s132, %s133
    %p142 = scmp.eq.s32.totalorder %s17, 0
    %p143 = por %p141, %p142
    %p144 = scmp.ne.s32.totalorder %s132, %s133
    %p145 = scmp.eq.s32.totalorder %s18, 1
    %p146 = por %p144, %p145
    %p148 = scmp.ne.s32.totalorder %s133, %s147
    %p149 = scmp.eq.s32.totalorder %s18, 0
    %p150 = por %p148, %p149
    %s151 = ssub.s32 %s12, %s19
    %p152 = scmp.eq.s32.totalorder %s151, 0
    %s154 = sadd.s32 %s153, 1
    %s155 = scalar_select %p152, %s153, %s154
    %p158 = pneg %p152
    %p159 = scmp.eq.s32.totalorder %s12, 1
    %p160 = por %p158, %p159
    %p161 = scmp.ne.s32.totalorder %s153, %s156
    %p162 = scmp.eq.s32.totalorder %s12, 0
    %p163 = por %p161, %p162
    %p164 = scmp.ne.s32.totalorder %s153, %s156
    %p165 = scmp.eq.s32.totalorder %s17, 1
    %p166 = por %p164, %p165
    %p167 = scmp.ne.s32.totalorder %s156, %s157
    %p168 = scmp.eq.s32.totalorder %s17, 0
    %p169 = por %p167, %p168
    %p170 = scmp.ne.s32.totalorder %s156, %s157
    %p171 = scmp.eq.s32.totalorder %s18, 1
    %p172 = por %p170, %p171
    %p174 = scmp.ne.s32.totalorder %s157, %s173
    %p175 = scmp.eq.s32.totalorder %s18, 0
    %p176 = por %p174, %p175
    %p177 = scmp.le.s32.totalorder 1, %s12
    %p178 = scmp.lt.s32.totalorder %s12, 3
    %p179 = pnand %p177, %p178
    %p180 = pneg %p179
    // Predicated region
    $region9: #{basic_block_pallas.1} parent=5 // pred_check
      _
    $region10: #{basic_block_pallas.1} parent=5 // pred_check_branch
      %182 = sbr.rel (%p179) target = $region12
    $region11: #{basic_block_pallas.1} parent=5 // pred_region
      %s183 = ssub.s32 %s12, 1
      // Predicated region
      $region13: #{basic_block_pallas.1} parent=11 // pred_check
        %p184 = pneg %p59
      $region14: #{basic_block_pallas.1} parent=11 // pred_check_branch
        %186 = sbr.rel (%p184) target = $region16
      $region15: #{basic_block_pallas.1} parent=11 // pred_region
        _
      $region16: #{basic_block_pallas.1} parent=11 // pred_fallthru
        _
      // Predicated region
      $region17: #{basic_block_pallas.1} parent=11 // pred_check
        %p187 = pneg %p80
      $region18: #{basic_block_pallas.1} parent=11 // pred_check_branch
        %189 = sbr.rel (%p187) target = $region20
      $region19: #{basic_block_pallas.1} parent=11 // pred_region
        _
      $region20: #{basic_block_pallas.1} parent=11 // pred_fallthru
        _
      // Predicated region
      $region21: #{basic_block_pallas.1} parent=11 // pred_check
        %p190 = pneg %p101
      $region22: #{basic_block_pallas.1} parent=11 // pred_check_branch
        %192 = sbr.rel (%p190) target = $region24
      $region23: #{basic_block_pallas.1} parent=11 // pred_region
        _
      $region24: #{basic_block_pallas.1} parent=11 // pred_fallthru
        _
      // Predicated region
      $region25: #{basic_block_pallas.1} parent=11 // pred_check
        %p193 = pneg %p122
      $region26: #{basic_block_pallas.1} parent=11 // pred_check_branch
        %195 = sbr.rel (%p193) target = $region28
      $region27: #{basic_block_pallas.1} parent=11 // pred_region
        _
      $region28: #{basic_block_pallas.1} parent=11 // pred_fallthru
        _
      // Predicated region
      $region29: #{basic_block_pallas.1} parent=11 // pred_check
        %p196 = pneg %p143
      $region30: #{basic_block_pallas.1} parent=11 // pred_check_branch
        %198 = sbr.rel (%p196) target = $region32
      $region31: #{basic_block_pallas.1} parent=11 // pred_region
        _
      $region32: #{basic_block_pallas.1} parent=11 // pred_fallthru
        _
    $region12: #{basic_block_pallas.1} parent=5 // pred_fallthru
      _
    %p199 = scmp.lt.s32.totalorder %s12, 2
    // Predicated region
    $region33: #{basic_block_pallas.1} parent=5 // pred_check
      %p200 = pneg %p199
    $region34: #{basic_block_pallas.1} parent=5 // pred_check_branch
      %202 = sbr.rel (%p200) target = $region36
    $region35: #{basic_block_pallas.1} parent=5 // pred_region
      // Predicated region
      $region37: #{basic_block_pallas.1} parent=35 // pred_check
        %p203 = pneg %p32
      $region38: #{basic_block_pallas.1} parent=35 // pred_check_branch
        %205 = sbr.rel (%p203) target = $region40
      $region39: #{basic_block_pallas.1} parent=35 // pred_region
        %p206 = scmp.lt.s32.totalorder %s12, 1
        %s207 = scalar_select %p206, %s12, 1
        %s208 = smul.addr %s207, 4
        %s209 = smul.addr %s208, 8
        %s210 = scalar_lea.vmem %s0, %s209
      $region40: #{basic_block_pallas.1} parent=35 // pred_fallthru
        _
    $region36: #{basic_block_pallas.1} parent=5 // pred_fallthru
      _
    %p211 = scmp.le.s32.totalorder 1, %s12
    %p212 = scmp.lt.s32.totalorder %s12, 3
    %p213 = pnand %p211, %p212
    %p214 = pneg %p213
    // Predicated region
    $region41: #{basic_block_pallas.1} parent=5 // pred_check
      _
    $region42: #{basic_block_pallas.1} parent=5 // pred_check_branch
      %216 = sbr.rel (%p213) target = $region44
    $region43: #{basic_block_pallas.1} parent=5 // pred_region
      %s217 = ssub.s32 %s12, 1
      %p218 = scmp.lt.s32.totalorder %s17, 1
      %s219 = scalar_select %p218, %s17, 1
      %s220 = smul.addr %s219, 4
      %s221 = smul.addr %s220, 8
      %s222 = scalar_lea.vmem %s0, %s221
      %p223 = pneg %p38
      %p224 = pneg %p35
      %p225 = pneg %p59
      %p226 = pneg %p56
      %p227 = pneg %p80
      %p228 = pneg %p77
      %p229 = pneg %p101
      %p230 = pneg %p98
      %p231 = pneg %p122
      %p232 = pneg %p119
      %p233 = pneg %p143
      %p234 = pneg %p140
      %p235 = pneg %p169
      %p236 = pneg %p166
      %p237 = scmp.lt.s32.totalorder %s17, 1
      %s238 = scalar_select %p237, %s17, 1
      %s239 = smul.addr %s238, 4
      %s240 = smul.addr %s239, 8
      %s241 = scalar_lea.vmem %s6, %s240
      %p242 = scmp.lt.s32.totalorder %s17, 1
      %s243 = scalar_select %p242, %s17, 1
      %s244 = smul.addr %s243, 4
      %s245 = smul.addr %s244, 8
      %s246 = scalar_lea.vmem %s0, %s245
      %p247 = scmp.lt.s32.totalorder %s17, 1
      %s248 = scalar_select %p247, %s17, 1
      %s249 = smul.addr %s248, 4
      %s250 = smul.addr %s249, 8
      %s251 = scalar_lea.vmem %s6, %s250
      %v253 = vld [vmem:[%s246] sm:$0xff]
      %v254 = vld [vmem:[%s246 + $0x8] sm:$0xff]
      %v255 = vld [vmem:[%s246 + $0x10] sm:$0xff]
      %v256 = vld [vmem:[%s246 + $0x18] sm:$0xff]
      %257 = vrot.lane.b32.xlu0 %v253, 17
      %v258 = vpop.permute.xlu0 %257
      %259 = vrot.lane.b32.xlu0 %v254, 17
      %v260 = vpop.permute.xlu0 %259
      %261 = vrot.lane.b32.xlu0 %v255, 17
      %v262 = vpop.permute.xlu0 %261
      %263 = vrot.lane.b32.xlu0 %v256, 17
      %v264 = vpop.permute.xlu0 %263
      %v265 = vlaneseq
      %v266 = vand.u32 %v265, 127
      %vm267 = vcmp.lt.s32.totalorder %v266, 17
      %v268 = vsel %vm267, %v262, %v264
      %v269 = vsel %vm267, %v260, %v262
      %v270 = vsel %vm267, %v258, %v260
      %v271 = vsel %vm267, %v264, %v258
      %v272 = vld [vmem:[%s1] ss:$8 sm:$0xf]
      %v274 = vperm.slane %v272, 0
      %v275 = vperm.slane %v272, 1
      %v276 = vperm.slane %v272, 2
      %v277 = vperm.slane %v272, 3
      %v282 = vmul.f32 %v271, %v274
      %v283 = vmul.f32 %v270, %v275
      %v284 = vmul.f32 %v269, %v276
      %v285 = vmul.f32 %v268, %v277
      %286 = vrot.lane.b32.xlu0 %v253, 16
      %v287 = vpop.permute.xlu0 %286
      %288 = vrot.lane.b32.xlu0 %v254, 16
      %v289 = vpop.permute.xlu0 %288
      %290 = vrot.lane.b32.xlu0 %v255, 16
      %v291 = vpop.permute.xlu0 %290
      %292 = vrot.lane.b32.xlu0 %v256, 16
      %v293 = vpop.permute.xlu0 %292
      %vm294 = vcmp.lt.s32.totalorder %v266, 16
      %v295 = vsel %vm294, %v291, %v293
      %v296 = vsel %vm294, %v289, %v291
      %v297 = vsel %vm294, %v287, %v289
      %v298 = vsel %vm294, %v293, %v287
      %s299 = scalar_lea.vmem %s1, 1
      %v300 = vld [vmem:[%s299] ss:$8 sm:$0xf]
      %v302 = vperm.slane %v300, 0
      %v303 = vperm.slane %v300, 1
      %v304 = vperm.slane %v300, 2
      %v305 = vperm.slane %v300, 3
      %v310 = vmul.f32 %v298, %v302
      %v311 = vmul.f32 %v297, %v303
      %v312 = vmul.f32 %v296, %v304
      %v313 = vmul.f32 %v295, %v305
      %314 = vrot.lane.b32.xlu0 %v253, 15
      %v315 = vpop.permute.xlu0 %314
      %316 = vrot.lane.b32.xlu0 %v254, 15
      %v317 = vpop.permute.xlu0 %316
      %318 = vrot.lane.b32.xlu0 %v255, 15
      %v319 = vpop.permute.xlu0 %318
      %320 = vrot.lane.b32.xlu0 %v256, 15
      %v321 = vpop.permute.xlu0 %320
      %vm322 = vcmp.lt.s32.totalorder %v266, 15
      %v323 = vsel %vm322, %v319, %v321
      %v324 = vsel %vm322, %v317, %v319
      %v325 = vsel %vm322, %v315, %v317
      %v326 = vsel %vm322, %v321, %v315
      %s327 = scalar_lea.vmem %s1, 2
      %v328 = vld [vmem:[%s327] ss:$8 sm:$0xf]
      %v330 = vperm.slane %v328, 0
      %v331 = vperm.slane %v328, 1
      %v332 = vperm.slane %v328, 2
      %v333 = vperm.slane %v328, 3
      %v338 = vmul.f32 %v326, %v330
      %v339 = vmul.f32 %v325, %v331
      %v340 = vmul.f32 %v324, %v332
      %v341 = vmul.f32 %v323, %v333
      %342 = vrot.lane.b32.xlu0 %v253, 1
      %v343 = vpop.permute.xlu0 %342
      %344 = vrot.lane.b32.xlu0 %v254, 1
      %v345 = vpop.permute.xlu0 %344
      %346 = vrot.lane.b32.xlu0 %v255, 1
      %v347 = vpop.permute.xlu0 %346
      %348 = vrot.lane.b32.xlu0 %v256, 1
      %v349 = vpop.permute.xlu0 %348
      %vm350 = vcmp.lt.s32.totalorder %v266, 1
      %v351 = vsel %vm350, %v347, %v349
      %v352 = vsel %vm350, %v345, %v347
      %v353 = vsel %vm350, %v343, %v345
      %v354 = vsel %vm350, %v349, %v343
      %s355 = scalar_lea.vmem %s1, 3
      %v356 = vld [vmem:[%s355] ss:$8 sm:$0xf]
      %v358 = vperm.slane %v356, 0
      %v359 = vperm.slane %v356, 1
      %v360 = vperm.slane %v356, 2
      %v361 = vperm.slane %v356, 3
      %v366 = vmul.f32 %v354, %v358
      %v367 = vmul.f32 %v353, %v359
      %v368 = vmul.f32 %v352, %v360
      %v369 = vmul.f32 %v351, %v361
      %370 = vrot.lane.b32.xlu0 %v253, 127
      %v371 = vpop.permute.xlu0 %370
      %372 = vrot.lane.b32.xlu0 %v254, 127
      %v373 = vpop.permute.xlu0 %372
      %374 = vrot.lane.b32.xlu0 %v255, 127
      %v375 = vpop.permute.xlu0 %374
      %376 = vrot.lane.b32.xlu0 %v256, 127
      %v377 = vpop.permute.xlu0 %376
      %vm378 = vcmp.lt.s32.totalorder %v266, 127
      %v379 = vsel %vm378, %v375, %v377
      %v380 = vsel %vm378, %v373, %v375
      %v381 = vsel %vm378, %v371, %v373
      %v382 = vsel %vm378, %v377, %v371
      %s383 = scalar_lea.vmem %s1, 5
      %v384 = vld [vmem:[%s383] ss:$8 sm:$0xf]
      %v386 = vperm.slane %v384, 0
      %v387 = vperm.slane %v384, 1
      %v388 = vperm.slane %v384, 2
      %v389 = vperm.slane %v384, 3
      %v394 = vmul.f32 %v381, %v386
      %v395 = vmul.f32 %v380, %v387
      %v396 = vmul.f32 %v379, %v388
      %v397 = vmul.f32 %v382, %v389
      %398 = vrot.lane.b32.xlu0 %v253, 113
      %v399 = vpop.permute.xlu0 %398
      %400 = vrot.lane.b32.xlu0 %v254, 113
      %v401 = vpop.permute.xlu0 %400
      %402 = vrot.lane.b32.xlu0 %v255, 113
      %v403 = vpop.permute.xlu0 %402
      %404 = vrot.lane.b32.xlu0 %v256, 113
      %v405 = vpop.permute.xlu0 %404
      %vm406 = vcmp.lt.s32.totalorder %v266, 113
      %v407 = vsel %vm406, %v403, %v405
      %v408 = vsel %vm406, %v401, %v403
      %v409 = vsel %vm406, %v399, %v401
      %v410 = vsel %vm406, %v405, %v399
      %s411 = scalar_lea.vmem %s1, 6
      %v412 = vld [vmem:[%s411] ss:$8 sm:$0xf]
      %v414 = vperm.slane %v412, 0
      %v415 = vperm.slane %v412, 1
      %v416 = vperm.slane %v412, 2
      %v417 = vperm.slane %v412, 3
      %v422 = vmul.f32 %v409, %v414
      %v423 = vmul.f32 %v408, %v415
      %v424 = vmul.f32 %v407, %v416
      %v425 = vmul.f32 %v410, %v417
      %426 = vrot.lane.b32.xlu0 %v253, 112
      %v427 = vpop.permute.xlu0 %426
      %428 = vrot.lane.b32.xlu0 %v254, 112
      %v429 = vpop.permute.xlu0 %428
      %430 = vrot.lane.b32.xlu0 %v255, 112
      %v431 = vpop.permute.xlu0 %430
      %432 = vrot.lane.b32.xlu0 %v256, 112
      %v433 = vpop.permute.xlu0 %432
      %vm434 = vcmp.lt.s32.totalorder %v266, 112
      %v435 = vsel %vm434, %v431, %v433
      %v436 = vsel %vm434, %v429, %v431
      %v437 = vsel %vm434, %v427, %v429
      %v438 = vsel %vm434, %v433, %v427
      %s439 = scalar_lea.vmem %s1, 7
      %v440 = vld [vmem:[%s439] ss:$8 sm:$0xf]
      %v442 = vperm.slane %v440, 0
      %v443 = vperm.slane %v440, 1
      %v444 = vperm.slane %v440, 2
      %v445 = vperm.slane %v440, 3
      %v450 = vmul.f32 %v437, %v442
      %v451 = vmul.f32 %v436, %v443
      %v452 = vmul.f32 %v435, %v444
      %v453 = vmul.f32 %v438, %v445
      %454 = vrot.lane.b32.xlu0 %v253, 111
      %v455 = vpop.permute.xlu0 %454
      %456 = vrot.lane.b32.xlu0 %v254, 111
      %v457 = vpop.permute.xlu0 %456
      %458 = vrot.lane.b32.xlu0 %v255, 111
      %v459 = vpop.permute.xlu0 %458
      %460 = vrot.lane.b32.xlu0 %v256, 111
      %v461 = vpop.permute.xlu0 %460
      %vm462 = vcmp.lt.s32.totalorder %v266, 111
      %v463 = vsel %vm462, %v459, %v461
      %v464 = vsel %vm462, %v457, %v459
      %v465 = vsel %vm462, %v455, %v457
      %v466 = vsel %vm462, %v461, %v455
      %s467 = scalar_lea.vmem %s1, 32
      %v468 = vld [vmem:[%s467] ss:$8 sm:$0xf]
      %v470 = vperm.slane %v468, 0
      %v471 = vperm.slane %v468, 1
      %v472 = vperm.slane %v468, 2
      %v473 = vperm.slane %v468, 3
      %v478 = vmul.f32 %v465, %v470
      %v479 = vmul.f32 %v464, %v471
      %v480 = vmul.f32 %v463, %v472
      %v481 = vmul.f32 %v466, %v473
      %v482 = vpack.c.bf16 %v310, %v282
      %v483 = vpack.c.bf16 %v311, %v283
      %v484 = vpack.c.bf16 %v312, %v284
      %v485 = vpack.c.bf16 %v313, %v285
      %v486 = vpack.c.bf16 %v366, %v338
      %v487 = vpack.c.bf16 %v367, %v339
      %v488 = vpack.c.bf16 %v368, %v340
      %v489 = vpack.c.bf16 %v369, %v341
      %v490 = vpack.c.bf16 %v394, %v253
      %v491 = vpack.c.bf16 %v395, %v254
      %v492 = vpack.c.bf16 %v396, %v255
      %v493 = vpack.c.bf16 %v397, %v256
      %v494 = vpack.c.bf16 %v450, %v422
      %v495 = vpack.c.bf16 %v451, %v423
      %v496 = vpack.c.bf16 %v452, %v424
      %v497 = vpack.c.bf16 %v453, %v425
      %v498 = vpack.c.bf16 %v478, %v478
      %v499 = vpack.c.bf16 %v479, %v479
      %v500 = vpack.c.bf16 %v480, %v480
      %v501 = vpack.c.bf16 %v481, %v481
      %v502 = vld [vmem:[%s2] sm:$0xf]
      %v503 = vld [vmem:[%s3] sm:$0xff]
      %505 = vset.pattern.permute.xlu0 0
      %506 = vperm.xlu0 %505, %v503
      %v507 = vpop.permute.xlu0 %506
      %vm509 = vcmask 588800
      %v511 = vsel %vm509, %v502, 0
      %vm513 = vcmask 1043456
      %v515 = vsel %vm513, %v498, 0
      %v518 = vsel %vm513, %v499, 0
      %v521 = vsel %vm513, %v500, 0
      %v524 = vsel %vm513, %v501, 0
      %526 = vmatpush.bf16.msra.mxu0 0
      %527 = vmatpush.bf16.msra.mxu0 0
      %528 = vmatpush.bf16.msra.mxu0 0
      %529 = vmatpush.bf16.msra.mxu0 %v515
      %530 = vmatpush.bf16.msra.mxu0 %v494
      %531 = vmatpush.bf16.msra.mxu0 %v490
      %532 = vmatpush.bf16.msra.mxu0 %v486
      %533 = vmatpush.bf16.msra.mxu0 %v482
      %534 = vmatmul.bf16.gmra.mxu0 %v511
      %v535 = vpop.f32.mrf.mxu0
      %v536 = vadd.f32 %v507, %v535
      %v537 = vpop.f32.mrf.mxu0
      %538 = vdwg.mxu0
      %539 = vmatpush.bf16.msra.mxu0 0
      %540 = vmatpush.bf16.msra.mxu0 0
      %541 = vmatpush.bf16.msra.mxu0 0
      %542 = vmatpush.bf16.msra.mxu0 %v518
      %543 = vmatpush.bf16.msra.mxu0 %v495
      %544 = vmatpush.bf16.msra.mxu0 %v491
      %545 = vmatpush.bf16.msra.mxu0 %v487
      %546 = vmatpush.bf16.msra.mxu0 %v483
      %547 = vmatmul.bf16.gmra.mxu0 %v511
      %v548 = vpop.f32.mrf.mxu0
      %v549 = vadd.f32 %v507, %v548
      %v550 = vpop.f32.mrf.mxu0
      %551 = vdwg.mxu0
      %552 = vmatpush.bf16.msra.mxu0 0
      %553 = vmatpush.bf16.msra.mxu0 0
      %554 = vmatpush.bf16.msra.mxu0 0
      %555 = vmatpush.bf16.msra.mxu0 %v521
      %556 = vmatpush.bf16.msra.mxu0 %v496
      %557 = vmatpush.bf16.msra.mxu0 %v492
      %558 = vmatpush.bf16.msra.mxu0 %v488
      %559 = vmatpush.bf16.msra.mxu0 %v484
      %560 = vmatmul.bf16.gmra.mxu0 %v511
      %v561 = vpop.f32.mrf.mxu0
      %v562 = vadd.f32 %v507, %v561
      %v563 = vpop.f32.mrf.mxu0
      %564 = vdwg.mxu0
      %565 = vmatpush.bf16.msra.mxu0 0
      %566 = vmatpush.bf16.msra.mxu0 0
      %567 = vmatpush.bf16.msra.mxu0 0
      %568 = vmatpush.bf16.msra.mxu0 %v524
      %569 = vmatpush.bf16.msra.mxu0 %v497
      %570 = vmatpush.bf16.msra.mxu0 %v493
      %571 = vmatpush.bf16.msra.mxu0 %v489
      %572 = vmatpush.bf16.msra.mxu0 %v485
      %573 = vmatmul.bf16.gmra.mxu0 %v511
      %v574 = vpop.f32.mrf.mxu0
      %v575 = vadd.f32 %v507, %v574
      %v576 = vpop.f32.mrf.mxu0
      %577 = vdwg.mxu0
      %v578 = vmax.f32 %v536, 0.0
      %v579 = vmax.f32 %v549, 0.0
      %v580 = vmax.f32 %v562, 0.0
      %v581 = vmax.f32 %v575, 0.0
      %582 = vrot.lane.b32.xlu0 %v578, 17
      %v583 = vpop.permute.xlu0 %582
      %584 = vrot.lane.b32.xlu0 %v579, 17
      %v585 = vpop.permute.xlu0 %584
      %586 = vrot.lane.b32.xlu0 %v580, 17
      %v587 = vpop.permute.xlu0 %586
      %588 = vrot.lane.b32.xlu0 %v581, 17
      %v589 = vpop.permute.xlu0 %588
      %v590 = vsel %vm267, %v587, %v589
      %v591 = vsel %vm267, %v585, %v587
      %v592 = vsel %vm267, %v583, %v585
      %v593 = vsel %vm267, %v589, %v583
      %v594 = vmul.f32 %v593, %v274
      %v595 = vmul.f32 %v592, %v275
      %v596 = vmul.f32 %v591, %v276
      %v597 = vmul.f32 %v590, %v277
      %598 = vrot.lane.b32.xlu0 %v578, 16
      %v599 = vpop.permute.xlu0 %598
      %600 = vrot.lane.b32.xlu0 %v579, 16
      %v601 = vpop.permute.xlu0 %600
      %602 = vrot.lane.b32.xlu0 %v580, 16
      %v603 = vpop.permute.xlu0 %602
      %604 = vrot.lane.b32.xlu0 %v581, 16
      %v605 = vpop.permute.xlu0 %604
      %v606 = vsel %vm294, %v603, %v605
      %v607 = vsel %vm294, %v601, %v603
      %v608 = vsel %vm294, %v599, %v601
      %v609 = vsel %vm294, %v605, %v599
      %v610 = vmul.f32 %v609, %v302
      %v611 = vmul.f32 %v608, %v303
      %v612 = vmul.f32 %v607, %v304
      %v613 = vmul.f32 %v606, %v305
      %614 = vrot.lane.b32.xlu0 %v578, 15
      %v615 = vpop.permute.xlu0 %614
      %616 = vrot.lane.b32.xlu0 %v579, 15
      %v617 = vpop.permute.xlu0 %616
      %618 = vrot.lane.b32.xlu0 %v580, 15
      %v619 = vpop.permute.xlu0 %618
      %620 = vrot.lane.b32.xlu0 %v581, 15
      %v621 = vpop.permute.xlu0 %620
      %v622 = vsel %vm322, %v619, %v621
      %v623 = vsel %vm322, %v617, %v619
      %v624 = vsel %vm322, %v615, %v617
      %v625 = vsel %vm322, %v621, %v615
      %v626 = vmul.f32 %v625, %v330
      %v627 = vmul.f32 %v624, %v331
      %v628 = vmul.f32 %v623, %v332
      %v629 = vmul.f32 %v622, %v333
      %630 = vrot.lane.b32.xlu0 %v578, 1
      %v631 = vpop.permute.xlu0 %630
      %632 = vrot.lane.b32.xlu0 %v579, 1
      %v633 = vpop.permute.xlu0 %632
      %634 = vrot.lane.b32.xlu0 %v580, 1
      %v635 = vpop.permute.xlu0 %634
      %636 = vrot.lane.b32.xlu0 %v581, 1
      %v637 = vpop.permute.xlu0 %636
      %v638 = vsel %vm350, %v635, %v637
      %v639 = vsel %vm350, %v633, %v635
      %v640 = vsel %vm350, %v631, %v633
      %v641 = vsel %vm350, %v637, %v631
      %v642 = vmul.f32 %v641, %v358
      %v643 = vmul.f32 %v640, %v359
      %v644 = vmul.f32 %v639, %v360
      %v645 = vmul.f32 %v638, %v361
      %646 = vrot.lane.b32.xlu0 %v578, 127
      %v647 = vpop.permute.xlu0 %646
      %648 = vrot.lane.b32.xlu0 %v579, 127
      %v649 = vpop.permute.xlu0 %648
      %650 = vrot.lane.b32.xlu0 %v580, 127
      %v651 = vpop.permute.xlu0 %650
      %652 = vrot.lane.b32.xlu0 %v581, 127
      %v653 = vpop.permute.xlu0 %652
      %v654 = vsel %vm378, %v651, %v653
      %v655 = vsel %vm378, %v649, %v651
      %v656 = vsel %vm378, %v647, %v649
      %v657 = vsel %vm378, %v653, %v647
      %v658 = vmul.f32 %v656, %v386
      %v659 = vmul.f32 %v655, %v387
      %v660 = vmul.f32 %v654, %v388
      %v661 = vmul.f32 %v657, %v389
      %662 = vrot.lane.b32.xlu0 %v578, 113
      %v663 = vpop.permute.xlu0 %662
      %664 = vrot.lane.b32.xlu0 %v579, 113
      %v665 = vpop.permute.xlu0 %664
      %666 = vrot.lane.b32.xlu0 %v580, 113
      %v667 = vpop.permute.xlu0 %666
      %668 = vrot.lane.b32.xlu0 %v581, 113
      %v669 = vpop.permute.xlu0 %668
      %v670 = vsel %vm406, %v667, %v669
      %v671 = vsel %vm406, %v665, %v667
      %v672 = vsel %vm406, %v663, %v665
      %v673 = vsel %vm406, %v669, %v663
      %v674 = vmul.f32 %v672, %v414
      %v675 = vmul.f32 %v671, %v415
      %v676 = vmul.f32 %v670, %v416
      %v677 = vmul.f32 %v673, %v417
      %678 = vrot.lane.b32.xlu0 %v578, 112
      %v679 = vpop.permute.xlu0 %678
      %680 = vrot.lane.b32.xlu0 %v579, 112
      %v681 = vpop.permute.xlu0 %680
      %682 = vrot.lane.b32.xlu0 %v580, 112
      %v683 = vpop.permute.xlu0 %682
      %684 = vrot.lane.b32.xlu0 %v581, 112
      %v685 = vpop.permute.xlu0 %684
      %v686 = vsel %vm434, %v683, %v685
      %v687 = vsel %vm434, %v681, %v683
      %v688 = vsel %vm434, %v679, %v681
      %v689 = vsel %vm434, %v685, %v679
      %v690 = vmul.f32 %v688, %v442
      %v691 = vmul.f32 %v687, %v443
      %v692 = vmul.f32 %v686, %v444
      %v693 = vmul.f32 %v689, %v445
      %694 = vrot.lane.b32.xlu0 %v578, 111
      %v695 = vpop.permute.xlu0 %694
      %696 = vrot.lane.b32.xlu0 %v579, 111
      %v697 = vpop.permute.xlu0 %696
      %698 = vrot.lane.b32.xlu0 %v580, 111
      %v699 = vpop.permute.xlu0 %698
      %700 = vrot.lane.b32.xlu0 %v581, 111
      %v701 = vpop.permute.xlu0 %700
      %v702 = vsel %vm462, %v699, %v701
      %v703 = vsel %vm462, %v697, %v699
      %v704 = vsel %vm462, %v695, %v697
      %v705 = vsel %vm462, %v701, %v695
      %v706 = vmul.f32 %v704, %v470
      %v707 = vmul.f32 %v703, %v471
      %v708 = vmul.f32 %v702, %v472
      %v709 = vmul.f32 %v705, %v473
      %v710 = vpack.c.bf16 %v610, %v594
      %v711 = vpack.c.bf16 %v611, %v595
      %v712 = vpack.c.bf16 %v612, %v596
      %v713 = vpack.c.bf16 %v613, %v597
      %v714 = vpack.c.bf16 %v642, %v626
      %v715 = vpack.c.bf16 %v643, %v627
      %v716 = vpack.c.bf16 %v644, %v628
      %v717 = vpack.c.bf16 %v645, %v629
      %v718 = vpack.c.bf16 %v658, %v578
      %v719 = vpack.c.bf16 %v659, %v579
      %v720 = vpack.c.bf16 %v660, %v580
      %v721 = vpack.c.bf16 %v661, %v581
      %v722 = vpack.c.bf16 %v690, %v674
      %v723 = vpack.c.bf16 %v691, %v675
      %v724 = vpack.c.bf16 %v692, %v676
      %v725 = vpack.c.bf16 %v693, %v677
      %v726 = vpack.c.bf16 %v706, %v706
      %v727 = vpack.c.bf16 %v707, %v707
      %v728 = vpack.c.bf16 %v708, %v708
      %v729 = vpack.c.bf16 %v709, %v709
      %v730 = vld [vmem:[%s4] sm:$0xf]
      %v731 = vld [vmem:[%s5] sm:$0xff]
      %733 = vset.pattern.permute.xlu0 0
      %734 = vperm.xlu0 %733, %v731
      %v735 = vpop.permute.xlu0 %734
      %v738 = vsel %vm509, %v730, 0
      %v741 = vsel %vm513, %v726, 0
      %v744 = vsel %vm513, %v727, 0
      %v747 = vsel %vm513, %v728, 0
      %v750 = vsel %vm513, %v729, 0
      %752 = vmatpush.bf16.msra.mxu0 0
      %753 = vmatpush.bf16.msra.mxu0 0
      %754 = vmatpush.bf16.msra.mxu0 0
      %755 = vmatpush.bf16.msra.mxu0 %v741
      %756 = vmatpush.bf16.msra.mxu0 %v722
      %757 = vmatpush.bf16.msra.mxu0 %v718
      %758 = vmatpush.bf16.msra.mxu0 %v714
      %759 = vmatpush.bf16.msra.mxu0 %v710
      %760 = vmatmul.bf16.gmra.mxu0 %v738
      %v761 = vpop.f32.mrf.mxu0
      %v762 = vadd.f32 %v735, %v761
      %v763 = vpop.f32.mrf.mxu0
      %764 = vdwg.mxu0
      %765 = vmatpush.bf16.msra.mxu0 0
      %766 = vmatpush.bf16.msra.mxu0 0
      %767 = vmatpush.bf16.msra.mxu0 0
      %768 = vmatpush.bf16.msra.mxu0 %v744
      %769 = vmatpush.bf16.msra.mxu0 %v723
      %770 = vmatpush.bf16.msra.mxu0 %v719
      %771 = vmatpush.bf16.msra.mxu0 %v715
      %772 = vmatpush.bf16.msra.mxu0 %v711
      %773 = vmatmul.bf16.gmra.mxu0 %v738
      %v774 = vpop.f32.mrf.mxu0
      %v775 = vadd.f32 %v735, %v774
      %v776 = vpop.f32.mrf.mxu0
      %777 = vdwg.mxu0
      %778 = vmatpush.bf16.msra.mxu0 0
      %779 = vmatpush.bf16.msra.mxu0 0
      %780 = vmatpush.bf16.msra.mxu0 0
      %781 = vmatpush.bf16.msra.mxu0 %v747
      %782 = vmatpush.bf16.msra.mxu0 %v724
      %783 = vmatpush.bf16.msra.mxu0 %v720
      %784 = vmatpush.bf16.msra.mxu0 %v716
      %785 = vmatpush.bf16.msra.mxu0 %v712
      %786 = vmatmul.bf16.gmra.mxu0 %v738
      %v787 = vpop.f32.mrf.mxu0
      %v788 = vadd.f32 %v735, %v787
      %v789 = vpop.f32.mrf.mxu0
      %790 = vdwg.mxu0
      %791 = vmatpush.bf16.msra.mxu0 0
      %792 = vmatpush.bf16.msra.mxu0 0
      %793 = vmatpush.bf16.msra.mxu0 0
      %794 = vmatpush.bf16.msra.mxu0 %v750
      %795 = vmatpush.bf16.msra.mxu0 %v725
      %796 = vmatpush.bf16.msra.mxu0 %v721
      %797 = vmatpush.bf16.msra.mxu0 %v717
      %798 = vmatpush.bf16.msra.mxu0 %v713
      %799 = vmatmul.bf16.gmra.mxu0 %v738
      %v800 = vpop.f32.mrf.mxu0
      %v801 = vadd.f32 %v735, %v800
      %v802 = vpop.f32.mrf.mxu0
      %803 = vdwg.mxu0
      %v804 = vadd.f32 %v762, %v253
      %v805 = vadd.f32 %v775, %v254
      %v806 = vadd.f32 %v788, %v255
      %v807 = vadd.f32 %v801, %v256
      %v808 = vmax.f32 %v804, 0.0
      %v809 = vmax.f32 %v805, 0.0
      %v810 = vmax.f32 %v806, 0.0
      %v811 = vmax.f32 %v807, 0.0
      %812 = vst [vmem:[%s251] sm:$0xff] %v808
      %813 = vst [vmem:[%s251 + $0x8] sm:$0xff] %v809
      %814 = vst [vmem:[%s251 + $0x10] sm:$0xff] %v810
      %815 = vst [vmem:[%s251 + $0x18] sm:$0xff] %v811
      %p816 = scmp.lt.s32.totalorder %s17, 1
      %s817 = scalar_select %p816, %s17, 1
      %s818 = smul.addr %s817, 4
      %s819 = smul.addr %s818, 8
      %s820 = scalar_lea.vmem %s6, %s819
      // Predicated region
      $region45: #{basic_block_pallas.1} parent=43 // pred_check
        %p821 = pneg %p166
      $region46: #{basic_block_pallas.1} parent=43 // pred_check_branch
        %823 = sbr.rel (%p821) target = $region48
      $region47: #{basic_block_pallas.1} parent=43 // pred_region
        _
      $region48: #{basic_block_pallas.1} parent=43 // pred_fallthru
        _
    $region44: #{basic_block_pallas.1} parent=5 // pred_fallthru
      _
    %p824 = scmp.le.s32.totalorder 2, %s12
    // Predicated region
    $region49: #{basic_block_pallas.1} parent=5 // pred_check
      %p825 = pneg %p824
    $region50: #{basic_block_pallas.1} parent=5 // pred_check_branch
      %827 = sbr.rel (%p825) target = $region52
    $region51: #{basic_block_pallas.1} parent=5 // pred_region
      %s828 = ssub.s32 %s12, 2
      // Predicated region
      $region53: #{basic_block_pallas.1} parent=51 // pred_check
        %p829 = pneg %p172
      $region54: #{basic_block_pallas.1} parent=51 // pred_check_branch
        %831 = sbr.rel (%p829) target = $region56
      $region55: #{basic_block_pallas.1} parent=51 // pred_region
        %p832 = scmp.lt.s32.totalorder %s18, 1
        %s833 = scalar_select %p832, %s18, 1
        %s834 = smul.addr %s833, 4
        %s835 = smul.addr %s834, 8
        %s836 = scalar_lea.vmem %s6, %s835
      $region56: #{basic_block_pallas.1} parent=51 // pred_fallthru
        _
    $region52: #{basic_block_pallas.1} parent=5 // pred_fallthru
      _
  $region6: #{basic_block_pallas.1} parent=0 // loop_footer
    %s16 = sadd.s32 1, %s12
  $region7: #{basic_block_pallas.1} parent=0 // loop_footer_branch
    %11 = sbr.rel target = $region3
  $region8: #{basic_block_pallas.1} parent=0 // loop_exit
    _

</llo_original>
